<compile_context>
chip_gen: v7x
topology: tpu7x:2x2x1
jax: 0.10.0
libtpu: 0.0.40
codegen_flags: <defaults>
</compile_context>

<pallas_src>
import numpy as np
import jax
import jax.numpy as jnp
from jax import lax
from jax.experimental import pallas as pl
from jax.experimental.pallas import tpu as pltpu
from functools import lru_cache


# ---------------------------------------------------------------------------
# Kernels
# ---------------------------------------------------------------------------
def _sinusoid_kernel_iota(offset_ref, inv_freq_ref, o_ref):
    """Positions generated in-kernel: pos = tile_start + row_index + offset."""
    block_rows = o_ref.shape[0]
    half = inv_freq_ref.shape[-1]
    s = pl.program_id(0)
    # Narrow (block_rows, 1) position column: single iota + convert + scalar add.
    rows = lax.broadcasted_iota(jnp.int32, (block_rows, 1), 0).astype(jnp.float32)
    base = (s * block_rows).astype(jnp.float32) + offset_ref[0]
    pos_col = rows + base                                       # (block_rows, 1)
    ang = pos_col * inv_freq_ref[...]                           # (block_rows, half)
    # Two slice stores instead of concat: no full-width temporary / relayout.
    o_ref[:, :half] = jnp.sin(ang).astype(o_ref.dtype)
    o_ref[:, half:] = jnp.cos(ang).astype(o_ref.dtype)


def _sinusoid_kernel_pos(offset_ref, pos_ref, inv_freq_ref, o_ref):
    """Explicit positions streamed in as a (block_rows, 1) column."""
    half = inv_freq_ref.shape[-1]
    p = pos_ref[...].astype(jnp.float32) + offset_ref[0]        # (block_rows, 1)
    ang = p * inv_freq_ref[...]                                 # (block_rows, half)
    o_ref[:, :half] = jnp.sin(ang).astype(o_ref.dtype)
    o_ref[:, half:] = jnp.cos(ang).astype(o_ref.dtype)


# ---------------------------------------------------------------------------
# pallas_call builder (cached on static params only; offset is a runtime scalar)
# ---------------------------------------------------------------------------
@lru_cache(maxsize=None)
def _build_emb_call(seq_len, half, block_rows, out_dtype_name, with_pos):
    out_dim = 2 * half
    out_dtype = np.dtype(out_dtype_name)
    grid = (pl.cdiv(seq_len, block_rows),)

    out_shape = jax.ShapeDtypeStruct((seq_len, out_dim), out_dtype)
    # Lane dim = full out_dim -> one contiguous (masked only on the trailing
    # partial block) output DMA per grid step, double-buffered by Pallas.
    out_spec = pl.BlockSpec((block_rows, out_dim), lambda s: (s, 0))
    inv_spec = pl.BlockSpec((1, half), lambda s: (0, 0))        # resident constant
    off_spec = pl.BlockSpec(memory_space=pltpu.MemorySpace.SMEM)  # runtime offset

    if with_pos:
        pos_spec = pl.BlockSpec((block_rows, 1), lambda s: (s, 0))
        kern = _sinusoid_kernel_pos
        in_specs = [off_spec, pos_spec, inv_spec]
    else:
        kern = _sinusoid_kernel_iota
        in_specs = [off_spec, inv_spec]

    return pl.pallas_call(
        kern,
        out_shape=out_shape,
        grid=grid,
        in_specs=in_specs,
        out_specs=out_spec,
        compiler_params=pltpu.CompilerParams(
            # Independent sequence tiles: shardable across v7x's two TensorCores.
            dimension_semantics=("parallel",)),
    )


def _pick_block_rows(seq_len, out_dim, itemsize):
    # ~4 MiB per output buffer (8 MiB double-buffered) -- comfortably under
    # v5e's 16 MiB default scoped-VMEM limit, tiny on v6e/v7x.
    cap = max(8, (4 * 1024 * 1024) // max(1, out_dim * itemsize))
    cap = max(8, (cap // 8) * 8)
    br = seq_len if seq_len <= cap else cap
    # v7x: ensure >= 2 sequence tiles so both TensorCores get work (no-op elsewhere).
    if seq_len > 8 and pl.cdiv(seq_len, br) < 2:
        br = max(8, ((pl.cdiv(seq_len, 2) + 7) // 8) * 8)
    return br


# ---------------------------------------------------------------------------
# Module wrapper
# ---------------------------------------------------------------------------
class FixedPositionalEmbedding:
    def __init__(self, dim: int):
        assert dim % 2 == 0, "dim must be even (sin/cos halves)"
        self.dim = dim
        half = dim // 2
        inv_freq = 1.0 / (10000.0 ** (jnp.arange(0, dim, 2, dtype=jnp.float32) / dim))
        # (1, half): lane-major, VMEM-resident across all grid steps.
        self.inv_freq = inv_freq.reshape(1, half)

    def __call__(self, x=None, pos=None, seq_dim: int = 1, offset=0,
                 block_rows=None, out_dtype=jnp.float32):
        half = self.dim // 2
        out_dim = 2 * half
        out_dtype = np.dtype(out_dtype)

        seq_len = int(x.shape[seq_dim]) if pos is None else int(pos.shape[0])
        if block_rows is None:
            block_rows = _pick_block_rows(seq_len, out_dim, out_dtype.itemsize)

        # Runtime SMEM scalar -> one compiled kernel handles every offset.
        # NOTE: like the f32 reference, positions/offsets beyond ~2^24 lose precision.
        offset_arr = jnp.asarray([offset], dtype=jnp.float32)

        call = _build_emb_call(seq_len, half, int(block_rows), out_dtype.name,
                               pos is not None)
        if pos is None:
            return call(offset_arr, self.inv_freq)
        pos2d = jnp.reshape(pos, (seq_len, 1))
        return call(offset_arr, pos2d, self.inv_freq)


# ---------------------------------------------------------------------------
# Main
# ---------------------------------------------------------------------------
if __name__ == "__main__":
    key = jax.random.PRNGKey(0)
    dim = 32
    batch, seq = 2, 8
    x = jax.random.normal(key, (batch, seq, dim), dtype=jnp.float32)

    mod = FixedPositionalEmbedding(dim)
    inv_freq_np = 1.0 / (10000.0 ** (np.arange(0, dim, 2, dtype=np.float32) / dim))

    def ref_emb(pos_np, offset=0.0):
        ang = (pos_np.astype(np.float32) + np.float32(offset))[:, None] * inv_freq_np[None, :]
        return np.concatenate([np.sin(ang), np.cos(ang)], axis=-1)

    # ---- default path: pos = arange(seq), offset = 0 ----
    out = mod(x)
    jax.block_until_ready(out)
    assert out.shape == (seq, dim) and out.dtype == jnp.float32
    assert np.allclose(np.asarray(out), ref_emb(np.arange(seq)), atol=1e-4), "default mismatch"

    # ---- runtime offset (reuses the same compiled kernel as above) ----
    out_off = mod(x, offset=3)
    jax.block_until_ready(out_off)
    assert np.allclose(np.asarray(out_off), ref_emb(np.arange(seq), 3.0), atol=1e-4), \
        "offset mismatch"

    # ---- explicit pos + tiled grid with a partial trailing block ----
    seq2 = 20
    pos = jax.random.randint(jax.random.PRNGKey(1), (seq2,), 0, 50, dtype=jnp.int32)
    out_pos = mod(None, pos=pos, offset=1, block_rows=8)  # 3 blocks, last one partial
    jax.block_until_ready(out_pos)
    assert np.allclose(np.asarray(out_pos), ref_emb(np.asarray(pos), 1.0), atol=1e-4), \
        "explicit-pos mismatch"

    # ---- in-kernel iota with explicit tiling (partial trailing block) ----
    x2 = jax.random.normal(jax.random.PRNGKey(2), (1, seq2, dim), dtype=jnp.float32)
    out_t = mod(x2, block_rows=8)
    jax.block_until_ready(out_t)
    assert np.allclose(np.asarray(out_t), ref_emb(np.arange(seq2)), atol=1e-4), \
        "tiled-iota mismatch"

    # ---- auto >=2-tile selection (v7x dual-TC path) on a longer sequence ----
    seq3 = 40
    x3 = jax.random.normal(jax.random.PRNGKey(3), (1, seq3, dim), dtype=jnp.float32)
    out_l = mod(x3)
    jax.block_until_ready(out_l)
    assert np.allclose(np.asarray(out_l), ref_emb(np.arange(seq3)), atol=1e-4), \
        "auto-tile mismatch"

    # ---- bf16 output option (halves HBM writeback on the mem-bound path) ----
    out_bf16 = mod(x, out_dtype=jnp.bfloat16)
    jax.block_until_ready(out_bf16)
    assert out_bf16.dtype == jnp.bfloat16
    assert np.allclose(np.asarray(out_bf16.astype(jnp.float32)),
                       ref_emb(np.arange(seq)), atol=1.5e-2), "bf16 mismatch"

    print("KERNEL_OK")
</pallas_src>

<mosaic_0001>
module attributes {stable_mosaic.version = 11 : i64} {
  func.func @_sinusoid_kernel_iota(%arg0: i32, %arg1: memref<1xf32, #tpu.memory_space<smem>>, %arg2: memref<1x16xf32, #tpu.memory_space<vmem>>, %arg3: memref<8x32xf32, #tpu.memory_space<vmem>>) attributes {dimension_semantics = [#tpu.dimension_semantics<parallel>], iteration_bounds = array<i64: 1>, scalar_prefetch = 0 : i64, scratch_operands = 0 : i64, tpu.core_type = #tpu.core_type<tc>, window_params = [{transform_indices = @transform_0, window_bounds = array<i64: 1>}, {pipeline_mode = #tpu.pipeline_mode<synchronous>, transform_indices = @transform_1, window_bounds = array<i64: 1, 16>}, {transform_indices = @transform_2, window_bounds = array<i64: 8, 32>}]} {
    %0 = tpu.iota {dimensions = array<i32: 0>} : vector<8x1xi32>
    %1 = arith.sitofp %0 : vector<8x1xi32> to vector<8x1xf32>
    %c8_i32 = arith.constant 8 : i32
    %2 = arith.muli %arg0, %c8_i32 : i32
    %3 = arith.sitofp %2 : i32 to f32
    %c0 = arith.constant 0 : index
    %4 = memref.load %arg1[%c0] : memref<1xf32, #tpu.memory_space<smem>>
    %5 = arith.addf %3, %4 : f32
    %6 = vector.broadcast %5 : f32 to vector<8x1xf32>
    %7 = arith.addf %1, %6 : vector<8x1xf32>
    %c0_0 = arith.constant 0 : index
    %c0_1 = arith.constant 0 : index
    %8 = vector.load %arg2[%c0_0, %c0_1] : memref<1x16xf32, #tpu.memory_space<vmem>>, vector<1x16xf32>
    %9 = vector.broadcast %7 : vector<8x1xf32> to vector<8x16xf32>
    %10 = vector.broadcast %8 : vector<1x16xf32> to vector<8x16xf32>
    %11 = arith.mulf %9, %10 : vector<8x16xf32>
    %12 = math.sin %11 : vector<8x16xf32>
    %c0_2 = arith.constant 0 : index
    %c0_3 = arith.constant 0 : index
    %13 = vector.load %arg3[%c0_2, %c0_3] : memref<8x32xf32, #tpu.memory_space<vmem>>, vector<8x16xf32>
    tpu.vector_store %arg3[%c0_2, %c0_3], %12 {strides = array<i32>} : memref<8x32xf32, #tpu.memory_space<vmem>>, vector<8x16xf32>,
    %14 = math.cos %11 : vector<8x16xf32>
    %c0_4 = arith.constant 0 : index
    %c16 = arith.constant 16 : index
    %15 = vector.load %arg3[%c0_4, %c16] : memref<8x32xf32, #tpu.memory_space<vmem>>, vector<8x16xf32>
    tpu.vector_store %arg3[%c0_4, %c16], %14 {strides = array<i32>} : memref<8x32xf32, #tpu.memory_space<vmem>>, vector<8x16xf32>,
    return
  }
  func.func @transform_0(%arg0: i32) -> i32 {
    %c0_i32 = arith.constant 0 : i32
    %c0_i32_0 = arith.constant 0 : i32
    return %c0_i32 : i32
  }
  func.func @transform_1(%arg0: i32) -> (i32, i32) {
    %c0_i32 = arith.constant 0 : i32
    %c0_i32_0 = arith.constant 0 : i32
    %c0_i32_1 = arith.constant 0 : i32
    return %c0_i32, %c0_i32_0 : i32, i32
  }
  func.func @transform_2(%arg0: i32) -> (i32, i32) {
    %c0_i32 = arith.constant 0 : i32
    %c0_i32_0 = arith.constant 0 : i32
    return %arg0, %c0_i32 : i32, i32
  }
}

</mosaic_0001>

<llo_original>
// kernel: tpu_custom_call.1
$region0: #{tpu_custom_call.1}
  #allocation0 [shape = 'u32[]', space=smem, size = 0x4, offset = 0x4, fixed_abs, tag = 'smem constant byte address 0x4 - core index']
  #allocation1 [shape = 'u32[144,128]{1,0:T(1,128)}', space=vmem, size = 0x12000, scoped, tag = 'internal scratch']
  #allocation2 [shape = 'f32[1]{0:T(128)S(6)}', space=smem, size = 0x200, scoped, tag = 'scoped memory for tpu_custom_call.1']
  %s0 = inlined_call_operand.<no memory space> [shape: f32[1], index: 0, kind: input, shape index: {}]
  %s1 = inlined_call_operand.vmem [shape: f32[1,16], index: 1, kind: input, shape index: {}]
  %s2 = inlined_call_operand.hbm [shape: f32[8,32], index: 2, kind: output, shape index: {}]
  %s3 = sld [smem:[#allocation0]]
  $region18: #{tpu_custom_call.1} parent=0
    _
  %s5 = ssub.s32 1, %s3
  %s6 = scalar_select 0, %s5, %s3
  %7 = sst [smem:[#allocation2]] %s0
  $region1: #{tpu_custom_call.1} parent=0
    #allocation3 [shape = 'u8[4096]{0}', space=vmem, size = 0x1000, scoped, tag = 'output window, operand 0, single buffered']
    #allocation4 [shape = 's32[1]{0}', space=sflag, size = 0x4, scoped, tag = 'scoped memory for tpu_custom_call.1']
    %8 = vsyncpa [#allocation4], 0
    // Predicated region
    $region2: #{tpu_custom_call.1} parent=1 // pred_check
      _
    $region3: #{tpu_custom_call.1} parent=1 // pred_check_branch
      %10 = sbr.rel (0) target = $region5
    $region4: #{tpu_custom_call.1} parent=1 // pred_region
      _
    $region5: #{tpu_custom_call.1} parent=1 // pred_fallthru
      _
    // Predicated region
    $region6: #{tpu_custom_call.1} parent=1 // pred_check
      _
    $region7: #{tpu_custom_call.1} parent=1 // pred_check_branch
      %12 = sbr.rel (0) target = $region9
    $region8: #{tpu_custom_call.1} parent=1 // pred_region
      _
    $region9: #{tpu_custom_call.1} parent=1 // pred_fallthru
      _
    %v13 = vlaneseq
    %v14 = vshrl.u32 %v13, 7
    %v15 = vcvt.s32.f32 %v14
    %s16 = smul.u32 0, 8
    %s17 = scvt.s32.f32 %s16
    %s18 = sld [smem:[#allocation2]]
    %s19 = sadd.f32 %s17, %s18
    %v20 = vstv %s19
    %v21 = vadd.f32 %v15, %v20
    %v22 = vld [vmem:[%s1] sm:$0x1]
    %v24 = vlaneseq
    %v25 = vshrl.u32 %v24, 7
    %v26 = vsub.s32 0, %v25
    %v27 = vrot.slane %v22, %v26
    %v29 = vmul.f32 %v21, %v27
    %v30 = vand.u32 2147483647, %v29
    %vm31 = vcmp.le.f32.partialorder %v30, 0.7853982
    %vm32 = vcmp.lt.s32.totalorder %v29, 0
    %v33 = vand.u32 %v29, 2139095040
    %v34 = vshrl.u32 %v33, 23
    %v35 = vsub.s32 %v34, 127
    %v36 = vand.u32 2147483647, %v29
    %v37 = vand.u32 %v36, 8388607
    %v38 = vor.u32 %v37, 8388608
    %v39 = vsub.s32 0, %v38
    %v40 = vadd.s32 %v35, 1
    %vm41 = vcmp.gt.s32.totalorder %v40, 0
    %v42 = vsel %vm41, %v40, 0
    %v43 = vshrl.u32 %v42, 5
    %v44 = vand.u32 %v42, 31
    %v45 = vsub.s32 32, %v44
    %v46 = vshrl.u32 683565275, %v45
    %v47 = vshll.u32 683565275, %v44
    %v48 = vshrl.u32 2475754826, %v45
    %v49 = vor.u32 %v47, %v48
    %v50 = vshll.u32 2475754826, %v44
    %v51 = vshrl.u32 2131351028, %v45
    %v52 = vor.u32 %v50, %v51
    %v53 = vshll.u32 2131351028, %v44
    %v54 = vshrl.u32 2102212464, %v45
    %v55 = vor.u32 %v53, %v54
    %v56 = vshll.u32 2102212464, %v44
    %v57 = vshrl.u32 920167782, %v45
    %v58 = vor.u32 %v56, %v57
    %v59 = vshll.u32 920167782, %v44
    %v60 = vshrl.u32 1326507024, %v45
    %v61 = vor.u32 %v59, %v60
    %vm62 = vcmp.lt.s32.totalorder %v43, 1
    %vm63 = vcmp.lt.s32.totalorder %v43, 2
    %vm64 = vcmp.lt.s32.totalorder %v43, 3
    %vm65 = vcmp.lt.s32.totalorder %v43, 4
    %v66 = vsel %vm62, %v46, %v49
    %v67 = vsel %vm65, %v55, 2102212464
    %v68 = vsel %vm64, %v52, %v67
    %v69 = vsel %vm63, %v66, %v68
    %v70 = vsel %vm62, %v49, %v52
    %v71 = vsel %vm65, %v58, 920167782
    %v72 = vsel %vm64, %v55, %v71
    %v73 = vsel %vm63, %v70, %v72
    %v74 = vsel %vm62, %v52, %v55
    %v75 = vsel %vm65, %v61, 1326507024
    %v76 = vsel %vm64, %v58, %v75
    %v77 = vsel %vm63, %v74, %v76
    %v78 = vshll.u32 %v38, 8
    %v79 = vmul.u32.u64.compose %v78, %v77
    %v80 = vextract.low.u32 %v79
    %v81 = vextract.high.u32 %v79
    %v82 = vmul.u32.u64.compose %v78, %v73
    %v83 = vextract.low.u32 %v82
    %v84 = vextract.high.u32 %v82
    %v85 = vmul.u32 %v78, %v69
    %v86 = vadd.s32 %v81, %v83
    %vm87 = vc.u32 %v81, %v83
    %v88 = vadd.s32 %v84, 1
    %v89 = vsel %vm87, %v88, %v84
    %v90 = vadd.s32 %v85, %v89
    %v91 = vadd.s32 %v90, 536870912
    %v92 = vshrl.u32 %v91, 30
    %v93 = vshll.u32 %v92, 30
    %v94 = vsub.s32 %v90, %v93
    %vm95 = vcmp.lt.s32.totalorder %v94, 0
    %v96 = vsub.s32 0, %v94
    %v97 = vsel %vm95, %v96, %v94
    %v98 = vclz %v97
    %v99 = vsub.s32 %v98, 2
    %vm100 = vcmp.gt.s32.totalorder 0, %v99
    %v101 = vsel %vm100, 0, %v99
    %v102 = vsub.s32 32, %v101
    %v103 = vshll.u32 %v94, %v101
    %v104 = vshrl.u32 %v86, %v102
    %v105 = vor.u32 %v103, %v104
    %v106 = vsub.s32 4294967266, %v101
    %v107 = vadd.s32 %v106, 127
    %v108 = vshll.u32 %v107, 23
    %v109 = vor.u32 4788187, %v108
    %v110 = vand.u32 2147483647, %v109
    %v112 = vcvt.s32.f32 %v105
    %v113 = vmul.f32 %v112, %v110
    %v114 = vxor.u32 %v113, 2147483648
    %v115 = vsel %vm32, %v114, %v113
    %v116 = vsub.s32 4, %v92
    %v117 = vsel %vm32, %v116, %v92
    %v118 = vsel %vm31, %v29, %v115
    %v119 = vsel %vm31, 0, %v117
    %v120 = vcosq.f32.pop %v118
    %v121 = vsinq.f32.pop %v118
    %vm122 = vweird.f32 %v29
    %v123 = vadd.s32 %v119, 3
    %v124 = vand.u32 %v123, 3
    %vm125 = vcmp.lt.s32.totalorder %v124, 2
    %vm126 = vcmp.eq.s32.totalorder %v124, 0
    %v127 = vxor.u32 %v121, 2147483648
    %v128 = vsel %vm126, %v120, %v127
    %vm129 = vcmp.eq.s32.totalorder %v124, 2
    %v130 = vxor.u32 %v120, 2147483648
    %v131 = vsel %vm129, %v130, %v121
    %v132 = vsel %vm125, %v128, %v131
    %v133 = vsel %vm122, nan, %v132
    %vm134 = vcmask 130048
    %135 = vst.msk [vmem:[#allocation3] sm:$0xff] %vm134, %v133
    %v136 = vand.u32 2147483647, %v29
    %vm137 = vcmp.le.f32.partialorder %v136, 0.7853982
    %vm138 = vcmp.lt.s32.totalorder %v29, 0
    %v139 = vand.u32 %v29, 2139095040
    %v140 = vshrl.u32 %v139, 23
    %v141 = vsub.s32 %v140, 127
    %v142 = vand.u32 2147483647, %v29
    %v143 = vand.u32 %v142, 8388607
    %v144 = vor.u32 %v143, 8388608
    %v145 = vsub.s32 0, %v144
    %v146 = vadd.s32 %v141, 1
    %vm147 = vcmp.gt.s32.totalorder %v146, 0
    %v148 = vsel %vm147, %v146, 0
    %v149 = vshrl.u32 %v148, 5
    %v150 = vand.u32 %v148, 31
    %v151 = vsub.s32 32, %v150
    %v152 = vshrl.u32 683565275, %v151
    %v153 = vshll.u32 683565275, %v150
    %v154 = vshrl.u32 2475754826, %v151
    %v155 = vor.u32 %v153, %v154
    %v156 = vshll.u32 2475754826, %v150
    %v157 = vshrl.u32 2131351028, %v151
    %v158 = vor.u32 %v156, %v157
    %v159 = vshll.u32 2131351028, %v150
    %v160 = vshrl.u32 2102212464, %v151
    %v161 = vor.u32 %v159, %v160
    %v162 = vshll.u32 2102212464, %v150
    %v163 = vshrl.u32 920167782, %v151
    %v164 = vor.u32 %v162, %v163
    %v165 = vshll.u32 920167782, %v150
    %v166 = vshrl.u32 1326507024, %v151
    %v167 = vor.u32 %v165, %v166
    %vm168 = vcmp.lt.s32.totalorder %v149, 1
    %vm169 = vcmp.lt.s32.totalorder %v149, 2
    %vm170 = vcmp.lt.s32.totalorder %v149, 3
    %vm171 = vcmp.lt.s32.totalorder %v149, 4
    %v172 = vsel %vm168, %v152, %v155
    %v173 = vsel %vm171, %v161, 2102212464
    %v174 = vsel %vm170, %v158, %v173
    %v175 = vsel %vm169, %v172, %v174
    %v176 = vsel %vm168, %v155, %v158
    %v177 = vsel %vm171, %v164, 920167782
    %v178 = vsel %vm170, %v161, %v177
    %v179 = vsel %vm169, %v176, %v178
    %v180 = vsel %vm168, %v158, %v161
    %v181 = vsel %vm171, %v167, 1326507024
    %v182 = vsel %vm170, %v164, %v181
    %v183 = vsel %vm169, %v180, %v182
    %v184 = vshll.u32 %v144, 8
    %v185 = vmul.u32.u64.compose %v184, %v183
    %v186 = vextract.low.u32 %v185
    %v187 = vextract.high.u32 %v185
    %v188 = vmul.u32.u64.compose %v184, %v179
    %v189 = vextract.low.u32 %v188
    %v190 = vextract.high.u32 %v188
    %v191 = vmul.u32 %v184, %v175
    %v192 = vadd.s32 %v187, %v189
    %vm193 = vc.u32 %v187, %v189
    %v194 = vadd.s32 %v190, 1
    %v195 = vsel %vm193, %v194, %v190
    %v196 = vadd.s32 %v191, %v195
    %v197 = vadd.s32 %v196, 536870912
    %v198 = vshrl.u32 %v197, 30
    %v199 = vshll.u32 %v198, 30
    %v200 = vsub.s32 %v196, %v199
    %vm201 = vcmp.lt.s32.totalorder %v200, 0
    %v202 = vsub.s32 0, %v200
    %v203 = vsel %vm201, %v202, %v200
    %v204 = vclz %v203
    %v205 = vsub.s32 %v204, 2
    %vm206 = vcmp.gt.s32.totalorder 0, %v205
    %v207 = vsel %vm206, 0, %v205
    %v208 = vsub.s32 32, %v207
    %v209 = vshll.u32 %v200, %v207
    %v210 = vshrl.u32 %v192, %v208
    %v211 = vor.u32 %v209, %v210
    %v212 = vsub.s32 4294967266, %v207
    %v213 = vadd.s32 %v212, 127
    %v214 = vshll.u32 %v213, 23
    %v215 = vor.u32 4788187, %v214
    %v216 = vand.u32 2147483647, %v215
    %v218 = vcvt.s32.f32 %v211
    %v219 = vmul.f32 %v218, %v216
    %v220 = vxor.u32 %v219, 2147483648
    %v221 = vsel %vm138, %v220, %v219
    %v222 = vsub.s32 4, %v198
    %v223 = vsel %vm138, %v222, %v198
    %v224 = vsel %vm137, %v29, %v221
    %v225 = vsel %vm137, 0, %v223
    %v226 = vcosq.f32.pop %v224
    %v227 = vsinq.f32.pop %v224
    %vm228 = vweird.f32 %v29
    %v229 = vand.u32 %v225, 3
    %vm230 = vcmp.lt.s32.totalorder %v229, 2
    %vm231 = vcmp.eq.s32.totalorder %v229, 0
    %v232 = vxor.u32 %v227, 2147483648
    %v233 = vsel %vm231, %v226, %v232
    %vm234 = vcmp.eq.s32.totalorder %v229, 2
    %v235 = vxor.u32 %v226, 2147483648
    %v236 = vsel %vm234, %v235, %v227
    %v237 = vsel %vm230, %v233, %v236
    %v238 = vsel %vm228, nan, %v237
    %240 = vrot.lane.b32.xlu0 %v238, 16
    %v241 = vpop.permute.xlu0 %240
    %vm243 = vcmask 261248
    %244 = vst.msk [vmem:[#allocation3] sm:$0xff] %vm243, %v241
    // Predicated region
    $region10: #{tpu_custom_call.1} parent=1 // pred_check
      _
    $region11: #{tpu_custom_call.1} parent=1 // pred_check_branch
      %246 = sbr.rel (0) target = $region13
    $region12: #{tpu_custom_call.1} parent=1 // pred_region
      %s248 = ssub.s32 128, 128
      %249 = vsyncadd [#allocation4], %s248
      %s251 = sshll.u32 [#allocation3], 4
      %s252 = int_to_ptr.vmem [resolvable:$true] %s251
      %254 = dma.vmem_to_hbm [thread:$0]  %s252, 128, %s2, [#allocation4]
    $region13: #{tpu_custom_call.1} parent=1 // pred_fallthru
      _
    // Predicated region
    $region14: #{tpu_custom_call.1} parent=1 // pred_check
      _
    $region15: #{tpu_custom_call.1} parent=1 // pred_check_branch
      %256 = sbr.rel (0) target = $region17
    $region16: #{tpu_custom_call.1} parent=1 // pred_region
      %257 = dma.done [#allocation4], 128
    $region17: #{tpu_custom_call.1} parent=1 // pred_fallthru
      _
    %258 = vsyncpa [#allocation4], 1

</llo_original>
